<compile_context>
chip_gen: v7x
topology: tpu7x:2x2x1
jax: 0.10.0
libtpu: 0.0.40
codegen_flags: <defaults>
</compile_context>

<pallas_src>
import functools
from math import sqrt

import jax
import jax.numpy as jnp
from jax import lax
from jax.experimental import pallas as pl
from jax.experimental.pallas import tpu as pltpu


def _round_up(x, m):
    return ((x + m - 1) // m) * m


def _pick_tile(padded, candidates):
    # largest candidate that divides the padded extent
    for t in candidates:
        if t <= padded and padded % t == 0:
            return t
    return padded


def _hyperlinear_kernel(x_ref, w_ref, b_ref, o_ref, *scratch,
                        weight_mod, exponent, tk, x_k_resident):
    # x_ref: (tm, K_pad) if K-resident else (tm, tk)
    # w_ref: (tk, tn)    b_ref: (1, tn)    o_ref: (tm, tn)
    # scratch: optional f32 (tm, tn) accumulator (only when o dtype != f32)
    k = pl.program_id(2)
    acc_ref = scratch[0] if scratch else o_ref   # accumulate in-place when f32

    @pl.when(k == 0)
    def _():
        acc_ref[...] = jnp.zeros_like(acc_ref)

    w = w_ref[...]
    if weight_mod == "abs":
        w = jnp.abs(w)                      # VPU, co-issues under the MXU
    elif weight_mod == "pow":
        if isinstance(exponent, int):
            w = lax.integer_pow(w, exponent)   # VPU multiplies, not EUP pow
        else:
            w = jnp.power(w, exponent)         # matches torch.pow float semantics

    if x_k_resident:
        x = x_ref[:, pl.ds(pl.multiple_of(k * tk, tk), tk)]
    else:
        x = x_ref[...]

    # weight pre-transposed to [K, OUT] in the wrapper -> native MXU orientation
    acc_ref[...] += jnp.dot(x, w, preferred_element_type=jnp.float32)

    @pl.when(k == pl.num_programs(2) - 1)
    def _():
        if scratch:
            o_ref[...] = (acc_ref[...] + b_ref[...]).astype(o_ref.dtype)
        else:
            o_ref[...] = o_ref[...] + b_ref[...]


def hyper_linear(inputs, weights, bias, *, weight_mod="abs", exponent=2,
                 tm=None, compute_dtype=None):
    """inputs: [N, in], weights: [out, in], bias: [out] -> [N, out].

    compute_dtype=jnp.bfloat16 is strongly recommended for performance on
    v6e/v7x (MXU bf16 peak); accumulation stays f32 either way.
    """
    assert inputs.ndim == 2, "we require inputs to be of shape [a*bs*t]*v"
    N, in_size = inputs.shape
    out_size, in_size_w = weights.shape
    assert in_size == in_size_w
    assert bias.shape == (out_size,)

    x_dtype = compute_dtype if compute_dtype is not None else inputs.dtype
    x_itemsize = jnp.dtype(x_dtype).itemsize
    out_dtype = inputs.dtype
    out_itemsize = jnp.dtype(out_dtype).itemsize

    # ---- weight_mod placement ------------------------------------------------
    # abs commutes with a downcast; pow/callable must be applied in f32 before
    # the cast for parity with PyTorch (square-then-matmul in f32).
    w_full = weights
    mod_in_kernel = weight_mod
    if callable(weight_mod) and not isinstance(weight_mod, str):
        w_full = weight_mod(w_full.astype(jnp.float32))
        mod_in_kernel = None
    elif weight_mod == "pow" and x_itemsize < 4:
        wf = w_full.astype(jnp.float32)
        w_full = (lax.integer_pow(wf, exponent) if isinstance(exponent, int)
                  else jnp.power(wf, exponent))
        mod_in_kernel = None
    elif weight_mod not in ("abs", "pow", None):
        mod_in_kernel = None

    # ---- tile / padding choices (lane-dense, MXU-filling) ----------------------
    sublane = {4: 8, 2: 16, 1: 32}.get(x_itemsize, 8)
    if tm is None:
        tm = 1024 if N >= 2048 else 512
    tm = min(tm, _round_up(N, sublane))            # don't over-pad tiny batches
    n_pad = _round_up(N, tm)

    # pad OUT / K to 256-multiples (when >128) so 256-wide tiles are selectable
    out_pad = _round_up(out_size, 256) if out_size > 128 else 128
    tn = _pick_tile(out_pad, (512, 256, 128))
    k_pad = _round_up(in_size, 256) if in_size > 128 else 128
    tk = _pick_tile(k_pad, (1024, 512, 256, 128))

    # K-resident x strip if it fits an 8 MiB/buffer budget (2x buffered)
    x_k_resident = tm * k_pad * x_itemsize <= (8 << 20)

    # ---- wrapper-side layout plumbing (zero pads keep the math exact) ---------
    # TODO(synk): emit weights already as [K, OUT] from the hyper-network to
    # avoid this extra HBM pass per call.
    def _pad2(a, r, c):
        pr, pc = r - a.shape[0], c - a.shape[1]
        return jnp.pad(a, ((0, pr), (0, pc))) if (pr or pc) else a

    x_p = _pad2(inputs, n_pad, k_pad).astype(x_dtype)
    w_t = _pad2(w_full.T, k_pad, out_pad).astype(x_dtype)
    b_p = jnp.pad(bias.astype(jnp.float32), (0, out_pad - out_size)
                  ).reshape(1, out_pad).astype(out_dtype
                  if out_itemsize >= 4 else jnp.float32)

    grid = (pl.cdiv(n_pad, tm), pl.cdiv(out_pad, tn), pl.cdiv(k_pad, tk))

    use_scratch = out_dtype != jnp.float32
    scratch_shapes = [pltpu.VMEM((tm, tn), jnp.float32)] if use_scratch else []

    if x_k_resident:
        x_spec = pl.BlockSpec((tm, k_pad), lambda i, j, k: (i, 0))
    else:
        x_spec = pl.BlockSpec((tm, tk), lambda i, j, k: (i, k))

    kernel = functools.partial(
        _hyperlinear_kernel, weight_mod=mod_in_kernel, exponent=exponent,
        tk=tk, x_k_resident=x_k_resident)

    # VMEM budget (double-buffered inputs/outputs + optional acc), v7x-safe.
    x_blk = tm * (k_pad if x_k_resident else tk) * x_itemsize
    w_blk = tk * tn * x_itemsize
    o_blk = tm * tn * out_itemsize
    b_blk = tn * 4
    vmem_need = 2 * (x_blk + w_blk + o_blk + b_blk)
    if use_scratch:
        vmem_need += tm * tn * 4
    vmem_limit = int(min(max(vmem_need + (4 << 20), 32 << 20), 60 << 20))

    cost = pl.CostEstimate(
        flops=2 * N * in_size * out_size,
        transcendentals=0,
        bytes_accessed=(N * in_size + in_size * out_size) * x_itemsize
        + (out_size + N * out_size) * out_itemsize,
    )

    out_padded = pl.pallas_call(
        kernel,
        out_shape=jax.ShapeDtypeStruct((n_pad, out_pad), out_dtype),
        grid_spec=pltpu.PrefetchScalarGridSpec(
            num_scalar_prefetch=0,
            grid=grid,
            in_specs=[
                x_spec,                                           # activations
                pl.BlockSpec((tk, tn), lambda i, j, k: (k, j)),   # weight [K,N]
                pl.BlockSpec((1, tn), lambda i, j, k: (0, j)),    # bias
            ],
            out_specs=pl.BlockSpec((tm, tn), lambda i, j, k: (i, j)),
            scratch_shapes=scratch_shapes,
        ),
        compiler_params=pltpu.CompilerParams(
            dimension_semantics=("parallel", "parallel", "arbitrary"),
            vmem_limit_bytes=vmem_limit,
        ),
        cost_estimate=cost,
    )(x_p, w_t, b_p)

    # slice the zero padding off (padded bias columns are zero, so no leakage)
    return out_padded[:N, :out_size]


if __name__ == "__main__":
    # Small shapes consistent with the module: a=2, bs=4, t=8 -> N=64 rows,
    # in_size(v)=32, out_size=16.
    a, bs, t = 2, 4, 8
    N = a * bs * t
    in_size, out_size = 32, 16

    key = jax.random.PRNGKey(0)
    k_in, k_w, k_b = jax.random.split(key, 3)

    inputs = jax.random.normal(k_in, (N, in_size), dtype=jnp.float32)
    # hyper-network supplied weights (use_hypernetwork=True path)
    weights = jax.random.normal(k_w, (out_size, in_size), dtype=jnp.float32)
    # module parameter b ~ uniform(-stdv, stdv), stdv = 1/sqrt(in_size)
    stdv = 1.0 / sqrt(in_size)
    bias = jax.random.uniform(
        k_b, (out_size,), minval=-stdv, maxval=stdv, dtype=jnp.float32
    )

    # default f32 path: exact parity with the PyTorch module
    out = jax.block_until_ready(hyper_linear(inputs, weights, bias, weight_mod="abs"))
    ref = inputs @ jnp.abs(weights).T + bias
    assert out.shape == (N, out_size)
    assert jnp.allclose(out, ref, atol=1e-5, rtol=1e-5), "abs(f32) mismatch"

    # 'pow' path with static int exponent (lax.integer_pow on the VPU)
    out_pow = jax.block_until_ready(
        hyper_linear(inputs, weights, bias, weight_mod="pow", exponent=2))
    ref_pow = inputs @ (weights ** 2).T + bias
    assert jnp.allclose(out_pow, ref_pow, atol=1e-4, rtol=1e-5), "pow mismatch"

    # recommended perf config: bf16 MXU inputs, f32 accumulation
    out_bf16 = jax.block_until_ready(
        hyper_linear(inputs, weights, bias, weight_mod="abs",
                     compute_dtype=jnp.bfloat16))
    assert jnp.allclose(out_bf16, ref, atol=5e-2, rtol=5e-2), "bf16 mismatch"

    print("KERNEL_OK")
</pallas_src>

<mosaic_0001>
module attributes {stable_mosaic.version = 11 : i64} {
  func.func @_hyperlinear_kernel(%arg0: i32, %arg1: i32, %arg2: i32, %arg3: memref<64x128xf32, #tpu.memory_space<vmem>>, %arg4: memref<128x128xf32, #tpu.memory_space<vmem>>, %arg5: memref<1x128xf32, #tpu.memory_space<vmem>>, %arg6: memref<64x128xf32, #tpu.memory_space<vmem>>) attributes {dimension_semantics = [#tpu.dimension_semantics<parallel>, #tpu.dimension_semantics<parallel>, #tpu.dimension_semantics<arbitrary>], iteration_bounds = array<i64: 1, 1, 1>, scalar_prefetch = 0 : i64, scratch_operands = 0 : i64, tpu.core_type = #tpu.core_type<tc>, window_params = [{transform_indices = @transform_0, window_bounds = array<i64: 64, 128>}, {transform_indices = @transform_1, window_bounds = array<i64: 128, 128>}, {transform_indices = @transform_2, window_bounds = array<i64: 1, 128>}, {transform_indices = @transform_3, window_bounds = array<i64: 64, 128>}]} {
    %c0_i32 = arith.constant 0 : i32
    %0 = arith.cmpi eq, %arg2, %c0_i32 : i32
    %1 = arith.extui %0 : i1 to i32
    %c0_i32_0 = arith.constant 0 : i32
    %2 = arith.cmpi ne, %1, %c0_i32_0 : i32
    scf.if %2 {
      %cst_9 = arith.constant 0.000000e+00 : f32
      %16 = vector.broadcast %cst_9 : f32 to vector<64x128xf32>
      %c0_10 = arith.constant 0 : index
      %c0_11 = arith.constant 0 : index
      %17 = vector.load %arg6[%c0_10, %c0_11] : memref<64x128xf32, #tpu.memory_space<vmem>>, vector<64x128xf32>
      tpu.vector_store %arg6[%c0_10, %c0_11], %16 {strides = array<i32>} : memref<64x128xf32, #tpu.memory_space<vmem>>, vector<64x128xf32>,
    } else {
    }
    %c0 = arith.constant 0 : index
    %c0_1 = arith.constant 0 : index
    %3 = vector.load %arg4[%c0, %c0_1] : memref<128x128xf32, #tpu.memory_space<vmem>>, vector<128x128xf32>
    %4 = math.absf %3 : vector<128x128xf32>
    %c128_i32 = arith.constant 128 : i32
    %5 = arith.muli %arg2, %c128_i32 : i32
    %6 = tpu.assume_multiple %5, 128 : i32
    %c0_2 = arith.constant 0 : index
    %7 = arith.index_cast %6 : i32 to index
    %8 = vector.load %arg3[%c0_2, %7] : memref<64x128xf32, #tpu.memory_space<vmem>>, vector<64x128xf32>
    %c0_3 = arith.constant 0 : index
    %c0_4 = arith.constant 0 : index
    %9 = vector.load %arg6[%c0_3, %c0_4] : memref<64x128xf32, #tpu.memory_space<vmem>>, vector<64x128xf32>
    %cst = arith.constant dense<0.000000e+00> : vector<64x128xf32>
    %10 = tpu.matmul %8, %4, %cst {dimension_numbers = #tpu.dot_dimension_numbers<[1], [0], [0], [1], [0, 0, 1, 1], [], []>} : vector<64x128xf32>, vector<128x128xf32>, vector<64x128xf32> -> vector<64x128xf32>
    %11 = arith.addf %9, %10 : vector<64x128xf32>
    %c0_5 = arith.constant 0 : index
    %c0_6 = arith.constant 0 : index
    %12 = vector.load %arg6[%c0_5, %c0_6] : memref<64x128xf32, #tpu.memory_space<vmem>>, vector<64x128xf32>
    tpu.vector_store %arg6[%c0_5, %c0_6], %11 {strides = array<i32>} : memref<64x128xf32, #tpu.memory_space<vmem>>, vector<64x128xf32>,
    %c0_i32_7 = arith.constant 0 : i32
    %13 = arith.cmpi eq, %arg2, %c0_i32_7 : i32
    %14 = arith.extui %13 : i1 to i32
    %c0_i32_8 = arith.constant 0 : i32
    %15 = arith.cmpi ne, %14, %c0_i32_8 : i32
    scf.if %15 {
      %c0_9 = arith.constant 0 : index
      %c0_10 = arith.constant 0 : index
      %16 = vector.load %arg6[%c0_9, %c0_10] : memref<64x128xf32, #tpu.memory_space<vmem>>, vector<64x128xf32>
      %c0_11 = arith.constant 0 : index
      %c0_12 = arith.constant 0 : index
      %17 = vector.load %arg5[%c0_11, %c0_12] : memref<1x128xf32, #tpu.memory_space<vmem>>, vector<1x128xf32>
      %18 = vector.broadcast %17 : vector<1x128xf32> to vector<64x128xf32>
      %19 = arith.addf %16, %18 : vector<64x128xf32>
      %c0_13 = arith.constant 0 : index
      %c0_14 = arith.constant 0 : index
      %20 = vector.load %arg6[%c0_13, %c0_14] : memref<64x128xf32, #tpu.memory_space<vmem>>, vector<64x128xf32>
      tpu.vector_store %arg6[%c0_13, %c0_14], %19 {strides = array<i32>} : memref<64x128xf32, #tpu.memory_space<vmem>>, vector<64x128xf32>,
    } else {
    }
    return
  }
  func.func @transform_0(%arg0: i32, %arg1: i32, %arg2: i32) -> (i32, i32) {
    %c0_i32 = arith.constant 0 : i32
    %c0_i32_0 = arith.constant 0 : i32
    return %arg0, %c0_i32 : i32, i32
  }
  func.func @transform_1(%arg0: i32, %arg1: i32, %arg2: i32) -> (i32, i32) {
    %c0_i32 = arith.constant 0 : i32
    return %arg2, %arg1 : i32, i32
  }
  func.func @transform_2(%arg0: i32, %arg1: i32, %arg2: i32) -> (i32, i32) {
    %c0_i32 = arith.constant 0 : i32
    %c0_i32_0 = arith.constant 0 : i32
    return %c0_i32, %arg1 : i32, i32
  }
  func.func @transform_3(%arg0: i32, %arg1: i32, %arg2: i32) -> (i32, i32) {
    %c0_i32 = arith.constant 0 : i32
    return %arg0, %arg1 : i32, i32
  }
}

</mosaic_0001>

<llo_original>
// kernel: tpu_custom_call.1
$region0: #{tpu_custom_call.1}
  #allocation0 [shape = 'u32[]', space=smem, size = 0x4, offset = 0x4, fixed_abs, tag = 'smem constant byte address 0x4 - core index']
  #allocation1 [shape = 'u32[144,128]{1,0:T(1,128)}', space=vmem, size = 0x12000, scoped, tag = 'internal scratch']
  %s0 = inlined_call_operand.hbm [shape: f32[64,128], index: 0, kind: input, shape index: {}]
  %s1 = inlined_call_operand.hbm [shape: f32[128,128], index: 1, kind: input, shape index: {}]
  %s2 = inlined_call_operand.vmem [shape: f32[1,128], index: 2, kind: input, shape index: {}]
  %s3 = inlined_call_operand.hbm [shape: f32[64,128], index: 3, kind: output, shape index: {}]
  %s4 = sld [smem:[#allocation0]]
  $region38: #{tpu_custom_call.1} parent=0
    _
  %s6 = ssub.s32 1, %s4
  %s7 = scalar_select 0, %s6, %s4
  $region1: #{tpu_custom_call.1} parent=0
    #allocation2 [shape = 'u8[32768]{0}', space=vmem, size = 0x8000, scoped, tag = 'input window, operand 0, single buffered']
    #allocation3 [shape = 's32[1]{0}', space=sflag, size = 0x4, scoped, tag = 'scoped memory for tpu_custom_call.1']
    #allocation4 [shape = 's32[1]{0}', space=sflag, size = 0x4, scoped, tag = 'scoped memory for tpu_custom_call.1']
    #allocation5 [shape = 'u8[65536]{0}', space=vmem, size = 0x10000, scoped, tag = 'input window, operand 1, single buffered']
    #allocation6 [shape = 's32[1]{0}', space=sflag, size = 0x4, scoped, tag = 'scoped memory for tpu_custom_call.1']
    #allocation7 [shape = 'u8[32768]{0}', space=vmem, size = 0x8000, scoped, tag = 'output window, operand 0, single buffered']
    %8 = vsyncpa [#allocation3], 0
    %9 = vsyncpa [#allocation6], 0
    %10 = vsyncpa [#allocation4], 0
    // Predicated region
    $region2: #{tpu_custom_call.1} parent=1 // pred_check
      _
    $region3: #{tpu_custom_call.1} parent=1 // pred_check_branch
      %12 = sbr.rel (0) target = $region5
    $region4: #{tpu_custom_call.1} parent=1 // pred_region
      %s14 = ssub.s32 1024, 1024
      %15 = vsyncadd [#allocation3], %s14
      %s16 = sshll.u32 [#allocation2], 4
      %s17 = int_to_ptr.vmem [resolvable:$true] %s16
      %22 = dma.hbm_to_vmem [thread:$0]  %s0, 1024, %s17, [#allocation3], 128, 128, 8
    $region5: #{tpu_custom_call.1} parent=1 // pred_fallthru
      _
    // Predicated region
    $region6: #{tpu_custom_call.1} parent=1 // pred_check
      _
    $region7: #{tpu_custom_call.1} parent=1 // pred_check_branch
      %24 = sbr.rel (0) target = $region9
    $region8: #{tpu_custom_call.1} parent=1 // pred_region
      %s26 = ssub.s32 2048, 2048
      %27 = vsyncadd [#allocation6], %s26
      %s28 = sshll.u32 [#allocation5], 4
      %s29 = int_to_ptr.vmem [resolvable:$true] %s28
      %34 = dma.hbm_to_vmem [thread:$0]  %s1, 2048, %s29, [#allocation6], 128, 128, 8
    $region9: #{tpu_custom_call.1} parent=1 // pred_fallthru
      _
    // Predicated region
    $region10: #{tpu_custom_call.1} parent=1 // pred_check
      _
    $region11: #{tpu_custom_call.1} parent=1 // pred_check_branch
      %36 = sbr.rel (0) target = $region13
    $region12: #{tpu_custom_call.1} parent=1 // pred_region
      _
    $region13: #{tpu_custom_call.1} parent=1 // pred_fallthru
      _
    // Predicated region
    $region14: #{tpu_custom_call.1} parent=1 // pred_check
      _
    $region15: #{tpu_custom_call.1} parent=1 // pred_check_branch
      %38 = sbr.rel (0) target = $region17
    $region16: #{tpu_custom_call.1} parent=1 // pred_region
      %39 = dma.done [#allocation3], 1024
    $region17: #{tpu_custom_call.1} parent=1 // pred_fallthru
      _
    // Predicated region
    $region18: #{tpu_custom_call.1} parent=1 // pred_check
      _
    $region19: #{tpu_custom_call.1} parent=1 // pred_check_branch
      %41 = sbr.rel (0) target = $region21
    $region20: #{tpu_custom_call.1} parent=1 // pred_region
      %42 = dma.done [#allocation6], 2048
    $region21: #{tpu_custom_call.1} parent=1 // pred_fallthru
      _
    %p43 = scmp.eq.s32.totalorder 0, 0
    // Predicated region
    $region22: #{tpu_custom_call.1} parent=1 // pred_check
      %p44 = pneg %p43
    $region23: #{tpu_custom_call.1} parent=1 // pred_check_branch
      %46 = sbr.rel (%p44) target = $region25
    $region24: #{tpu_custom_call.1} parent=1 // pred_region
      %47 = vst [vmem:[#allocation7] sm:$0xff] 0.0
      %48 = vst [vmem:[#allocation7 + $0x8] sm:$0xff] 0.0
      %49 = vst [vmem:[#allocation7 + $0x10] sm:$0xff] 0.0
      %50 = vst [vmem:[#allocation7 + $0x18] sm:$0xff] 0.0
      %51 = vst [vmem:[#allocation7 + $0x20] sm:$0xff] 0.0
      %52 = vst [vmem:[#allocation7 + $0x28] sm:$0xff] 0.0
      %53 = vst [vmem:[#allocation7 + $0x30] sm:$0xff] 0.0
      %54 = vst [vmem:[#allocation7 + $0x38] sm:$0xff] 0.0
    $region25: #{tpu_custom_call.1} parent=1 // pred_fallthru
      _
    %v55 = vld [vmem:[#allocation5] sm:$0xff]
    %v56 = vld [vmem:[#allocation5 + $0x8] sm:$0xff]
    %v57 = vld [vmem:[#allocation5 + $0x10] sm:$0xff]
    %v58 = vld [vmem:[#allocation5 + $0x18] sm:$0xff]
    %v59 = vld [vmem:[#allocation5 + $0x20] sm:$0xff]
    %v60 = vld [vmem:[#allocation5 + $0x28] sm:$0xff]
    %v61 = vld [vmem:[#allocation5 + $0x30] sm:$0xff]
    %v62 = vld [vmem:[#allocation5 + $0x38] sm:$0xff]
    %v63 = vld [vmem:[#allocation5 + $0x40] sm:$0xff]
    %v64 = vld [vmem:[#allocation5 + $0x48] sm:$0xff]
    %v65 = vld [vmem:[#allocation5 + $0x50] sm:$0xff]
    %v66 = vld [vmem:[#allocation5 + $0x58] sm:$0xff]
    %v67 = vld [vmem:[#allocation5 + $0x60] sm:$0xff]
    %v68 = vld [vmem:[#allocation5 + $0x68] sm:$0xff]
    %v69 = vld [vmem:[#allocation5 + $0x70] sm:$0xff]
    %v70 = vld [vmem:[#allocation5 + $0x78] sm:$0xff]
    %v71 = vand.u32 2147483647, %v55
    %v72 = vand.u32 2147483647, %v56
    %v73 = vand.u32 2147483647, %v57
    %v74 = vand.u32 2147483647, %v58
    %v75 = vand.u32 2147483647, %v59
    %v76 = vand.u32 2147483647, %v60
    %v77 = vand.u32 2147483647, %v61
    %v78 = vand.u32 2147483647, %v62
    %v79 = vand.u32 2147483647, %v63
    %v80 = vand.u32 2147483647, %v64
    %v81 = vand.u32 2147483647, %v65
    %v82 = vand.u32 2147483647, %v66
    %v83 = vand.u32 2147483647, %v67
    %v84 = vand.u32 2147483647, %v68
    %v85 = vand.u32 2147483647, %v69
    %v86 = vand.u32 2147483647, %v70
    %s87 = smul.u32 0, 128
    %s88 = sshra.s32 %s87, 7
    %s89 = sand.u32 %s87, 127
    %s90 = scalar_lea.vmem [#allocation2], %s88
    %v91 = vld [vmem:[%s90] sm:$0xff]
    %v92 = vld [vmem:[%s90 + $0x8] sm:$0xff]
    %v93 = vld [vmem:[%s90 + $0x10] sm:$0xff]
    %v94 = vld [vmem:[%s90 + $0x18] sm:$0xff]
    %v95 = vld [vmem:[%s90 + $0x20] sm:$0xff]
    %v96 = vld [vmem:[%s90 + $0x28] sm:$0xff]
    %v97 = vld [vmem:[%s90 + $0x30] sm:$0xff]
    %v98 = vld [vmem:[%s90 + $0x38] sm:$0xff]
    %v99 = vld [vmem:[#allocation7] sm:$0xff]
    %v100 = vld [vmem:[#allocation7 + $0x8] sm:$0xff]
    %v101 = vld [vmem:[#allocation7 + $0x10] sm:$0xff]
    %v102 = vld [vmem:[#allocation7 + $0x18] sm:$0xff]
    %v103 = vld [vmem:[#allocation7 + $0x20] sm:$0xff]
    %v104 = vld [vmem:[#allocation7 + $0x28] sm:$0xff]
    %v105 = vld [vmem:[#allocation7 + $0x30] sm:$0xff]
    %v106 = vld [vmem:[#allocation7 + $0x38] sm:$0xff]
    %107 = vmatprep.subr.mxu0 0.0
    %108 = vmatpush1.msra.mxu0 %v71
    %109 = vmatprep.subr.mxu0 0.0
    %110 = vmatpush1.msra.mxu0 %v72
    %111 = vmatprep.subr.mxu0 0.0
    %112 = vmatpush1.msra.mxu0 %v73
    %113 = vmatprep.subr.mxu0 0.0
    %114 = vmatpush1.msra.mxu0 %v74
    %115 = vmatprep.subr.mxu0 0.0
    %116 = vmatpush1.msra.mxu0 %v75
    %117 = vmatprep.subr.mxu0 0.0
    %118 = vmatpush1.msra.mxu0 %v76
    %119 = vmatprep.subr.mxu0 0.0
    %120 = vmatpush1.msra.mxu0 %v77
    %121 = vmatprep.subr.mxu0 0.0
    %122 = vmatpush1.msra.mxu0 %v78
    %123 = vmatprep.subr.mxu0 0.0
    %124 = vmatpush1.msra.mxu0 %v79
    %125 = vmatprep.subr.mxu0 0.0
    %126 = vmatpush1.msra.mxu0 %v80
    %127 = vmatprep.subr.mxu0 0.0
    %128 = vmatpush1.msra.mxu0 %v81
    %129 = vmatprep.subr.mxu0 0.0
    %130 = vmatpush1.msra.mxu0 %v82
    %131 = vmatprep.subr.mxu0 0.0
    %132 = vmatpush1.msra.mxu0 %v83
    %133 = vmatprep.subr.mxu0 0.0
    %134 = vmatpush1.msra.mxu0 %v84
    %135 = vmatprep.subr.mxu0 0.0
    %136 = vmatpush1.msra.mxu0 %v85
    %137 = vmatprep.subr.mxu0 0.0
    %138 = vmatpush1.msra.mxu0 %v86
    %139 = vmatprep.subr.mxu0 0.0
    %140 = vmatpush1.msra.mxu0 0.0
    %141 = vmatprep.subr.mxu0 0.0
    %142 = vmatpush1.msra.mxu0 0.0
    %143 = vmatprep.subr.mxu0 0.0
    %144 = vmatpush1.msra.mxu0 0.0
    %145 = vmatprep.subr.mxu0 0.0
    %146 = vmatpush1.msra.mxu0 0.0
    %147 = vmatprep.subr.mxu0 0.0
    %148 = vmatpush1.msra.mxu0 0.0
    %149 = vmatprep.subr.mxu0 0.0
    %150 = vmatpush1.msra.mxu0 0.0
    %151 = vmatprep.subr.mxu0 0.0
    %152 = vmatpush1.msra.mxu0 0.0
    %153 = vmatprep.subr.mxu0 0.0
    %154 = vmatpush1.msra.mxu0 0.0
    %155 = vmatprep.subr.mxu0 0.0
    %156 = vmatpush1.msra.mxu0 0.0
    %157 = vmatprep.subr.mxu0 0.0
    %158 = vmatpush1.msra.mxu0 0.0
    %159 = vmatprep.subr.mxu0 0.0
    %160 = vmatpush1.msra.mxu0 0.0
    %161 = vmatprep.subr.mxu0 0.0
    %162 = vmatpush1.msra.mxu0 0.0
    %163 = vmatprep.subr.mxu0 0.0
    %164 = vmatpush1.msra.mxu0 0.0
    %165 = vmatprep.subr.mxu0 0.0
    %166 = vmatpush1.msra.mxu0 0.0
    %167 = vmatprep.subr.mxu0 0.0
    %168 = vmatpush1.msra.mxu0 0.0
    %169 = vmatprep.subr.mxu0 0.0
    %170 = vmatpush1.msra.mxu0 0.0
    %171 = vmatprep.mubr.f32.mxu0 0.0
    %172 = vmatmul.mubr.f32.gmra.mrb[0].mxu0 %v91
    %v173 = vpop.f32.mrb[0].mxu0
    %v174 = vadd.f32 0.0, %v173
    %v175 = vpop.f32.mrb[0].mxu0
    %176 = vmatprep.mubr.f32.mxu0 0.0
    %177 = vmatmul.mubr.f32.gmra.mrb[0].mxu0 %v92
    %v178 = vpop.f32.mrb[0].mxu0
    %v179 = vadd.f32 0.0, %v178
    %v180 = vpop.f32.mrb[0].mxu0
    %181 = vmatprep.mubr.f32.mxu0 0.0
    %182 = vmatmul.mubr.f32.gmra.mrb[0].mxu0 %v93
    %v183 = vpop.f32.mrb[0].mxu0
    %v184 = vadd.f32 0.0, %v183
    %v185 = vpop.f32.mrb[0].mxu0
    %186 = vmatprep.mubr.f32.mxu0 0.0
    %187 = vmatmul.mubr.f32.gmra.mrb[0].mxu0 %v94
    %v188 = vpop.f32.mrb[0].mxu0
    %v189 = vadd.f32 0.0, %v188
    %v190 = vpop.f32.mrb[0].mxu0
    %191 = vmatprep.mubr.f32.mxu0 0.0
    %192 = vmatmul.mubr.f32.gmra.mrb[0].mxu0 %v95
    %v193 = vpop.f32.mrb[0].mxu0
    %v194 = vadd.f32 0.0, %v193
    %v195 = vpop.f32.mrb[0].mxu0
    %196 = vmatprep.mubr.f32.mxu0 0.0
    %197 = vmatmul.mubr.f32.gmra.mrb[0].mxu0 %v96
    %v198 = vpop.f32.mrb[0].mxu0
    %v199 = vadd.f32 0.0, %v198
    %v200 = vpop.f32.mrb[0].mxu0
    %201 = vmatprep.mubr.f32.mxu0 0.0
    %202 = vmatmul.mubr.f32.gmra.mrb[0].mxu0 %v97
    %v203 = vpop.f32.mrb[0].mxu0
    %v204 = vadd.f32 0.0, %v203
    %v205 = vpop.f32.mrb[0].mxu0
    %206 = vmatprep.mubr.f32.mxu0 0.0
    %207 = vmatmul.mubr.f32.gmra.mrb[0].mxu0 %v98
    %v208 = vpop.f32.mrb[0].mxu0
    %v209 = vadd.f32 0.0, %v208
    %v210 = vpop.f32.mrb[0].mxu0
    %211 = vdwg.mxu0
    %v212 = vadd.f32 %v99, %v174
    %v213 = vadd.f32 %v100, %v179
    %v214 = vadd.f32 %v101, %v184
    %v215 = vadd.f32 %v102, %v189
    %v216 = vadd.f32 %v103, %v194
    %v217 = vadd.f32 %v104, %v199
    %v218 = vadd.f32 %v105, %v204
    %v219 = vadd.f32 %v106, %v209
    %220 = vst [vmem:[#allocation7] sm:$0xff] %v212
    %221 = vst [vmem:[#allocation7 + $0x8] sm:$0xff] %v213
    %222 = vst [vmem:[#allocation7 + $0x10] sm:$0xff] %v214
    %223 = vst [vmem:[#allocation7 + $0x18] sm:$0xff] %v215
    %224 = vst [vmem:[#allocation7 + $0x20] sm:$0xff] %v216
    %225 = vst [vmem:[#allocation7 + $0x28] sm:$0xff] %v217
    %226 = vst [vmem:[#allocation7 + $0x30] sm:$0xff] %v218
    %227 = vst [vmem:[#allocation7 + $0x38] sm:$0xff] %v219
    // Predicated region
    $region26: #{tpu_custom_call.1} parent=1 // pred_check
      %p228 = pneg %p43
    $region27: #{tpu_custom_call.1} parent=1 // pred_check_branch
      %230 = sbr.rel (%p228) target = $region29
    $region28: #{tpu_custom_call.1} parent=1 // pred_region
      %v231 = vld [vmem:[#allocation7] sm:$0xff]
      %v232 = vld [vmem:[#allocation7 + $0x8] sm:$0xff]
      %v233 = vld [vmem:[#allocation7 + $0x10] sm:$0xff]
      %v234 = vld [vmem:[#allocation7 + $0x18] sm:$0xff]
      %v235 = vld [vmem:[#allocation7 + $0x20] sm:$0xff]
      %v236 = vld [vmem:[#allocation7 + $0x28] sm:$0xff]
      %v237 = vld [vmem:[#allocation7 + $0x30] sm:$0xff]
      %v238 = vld [vmem:[#allocation7 + $0x38] sm:$0xff]
      %v239 = vld [vmem:[%s2] sm:$0x1]
      %v241 = vlaneseq
      %v242 = vshrl.u32 %v241, 7
      %v243 = vsub.s32 0, %v242
      %v244 = vrot.slane %v239, %v243
      %v246 = vadd.f32 %v231, %v244
      %v247 = vadd.f32 %v232, %v244
      %v248 = vadd.f32 %v233, %v244
      %v249 = vadd.f32 %v234, %v244
      %v250 = vadd.f32 %v235, %v244
      %v251 = vadd.f32 %v236, %v244
      %v252 = vadd.f32 %v237, %v244
      %v253 = vadd.f32 %v238, %v244
      %254 = vst [vmem:[#allocation7] sm:$0xff] %v246
      %255 = vst [vmem:[#allocation7 + $0x8] sm:$0xff] %v247
      %256 = vst [vmem:[#allocation7 + $0x10] sm:$0xff] %v248
      %257 = vst [vmem:[#allocation7 + $0x18] sm:$0xff] %v249
      %258 = vst [vmem:[#allocation7 + $0x20] sm:$0xff] %v250
      %259 = vst [vmem:[#allocation7 + $0x28] sm:$0xff] %v251
      %260 = vst [vmem:[#allocation7 + $0x30] sm:$0xff] %v252
      %261 = vst [vmem:[#allocation7 + $0x38] sm:$0xff] %v253
    $region29: #{tpu_custom_call.1} parent=1 // pred_fallthru
      _
    // Predicated region
    $region30: #{tpu_custom_call.1} parent=1 // pred_check
      _
    $region31: #{tpu_custom_call.1} parent=1 // pred_check_branch
      %263 = sbr.rel (0) target = $region33
    $region32: #{tpu_custom_call.1} parent=1 // pred_region
      %s265 = ssub.s32 1024, 1024
      %266 = vsyncadd [#allocation4], %s265
      %s267 = sshll.u32 [#allocation7], 4
      %s268 = int_to_ptr.vmem [resolvable:$true] %s267
      %273 = dma.vmem_to_hbm [thread:$0]  %s268, 1024, %s3, [#allocation4], 128, 128, 8
    $region33: #{tpu_custom_call.1} parent=1 // pred_fallthru
      _
    // Predicated region
    $region34: #{tpu_custom_call.1} parent=1 // pred_check
      _
    $region35: #{tpu_custom_call.1} parent=1 // pred_check_branch
      %275 = sbr.rel (0) target = $region37
    $region36: #{tpu_custom_call.1} parent=1 // pred_region
      %276 = dma.done [#allocation4], 1024
    $region37: #{tpu_custom_call.1} parent=1 // pred_fallthru
      _
    %277 = vsyncpa [#allocation3], 1
    %278 = vsyncpa [#allocation6], 1
    %279 = vsyncpa [#allocation4], 1

</llo_original>
